<compile_context>
chip_gen: v5e
topology: v5e:2x2
jax: 0.10.0
libtpu: 0.0.40
codegen_flags: <defaults>
</compile_context>

<pallas_src>
import functools

import jax
import jax.numpy as jnp
from jax.experimental import pallas as pl
from jax.experimental.pallas import tpu as pltpu


def _round_up(n: int, m: int) -> int:
    return ((n + m - 1) // m) * m


def classblock_kernel(
    x_ref,    # (TILE_B, D_in)  f32 input rows (read once from HBM)
    w_ref,    # (D_in,  C_pad)  bf16 collapsed (BN-folded Linear1 @ Linear2) weight
    b_ref,    # (1,     C_pad)  f32 collapsed bias
    out_ref,  # (TILE_B, C_pad) f32 lane-dense output tile
):
    # bf16 MXU matmul with f32 accumulation; bias add stays f32 on the VPU
    # (v5e has no bf16 VPU).
    x = x_ref[...].astype(jnp.bfloat16)
    acc = jnp.dot(x, w_ref[...], preferred_element_type=jnp.float32)
    out_ref[...] = (acc + b_ref[...]).astype(out_ref.dtype)
    # TODO(synk): relu=True (LeakyReLU) / training-mode dropout / batch-stat BN
    # would forbid the Linear-Linear collapse; that configuration needs the
    # original two-matmul kernel and is not implemented here (eval semantics).


@functools.partial(jax.jit, static_argnames=("tile_b",))
def classblock_forward(x, w1, b1, gamma, beta, running_mean, running_var,
                       w2, b2, *, tile_b=2048):
    eps = 1e-5
    B, D_in = x.shape
    NB = w1.shape[0]     # PyTorch Linear weight: (NB, D_in)
    C = w2.shape[0]      # PyTorch Linear weight: (C, NB)
    del NB

    # --- fold eval-mode BN into Linear1, then collapse Linear1 ∘ Linear2 ---
    # (exact: relu=False and Dropout is identity in eval mode)
    scale = gamma * jax.lax.rsqrt(running_var + eps)            # (NB,)
    w1_f = (w1 * scale[:, None]).T                              # (D_in, NB)
    b1_f = (b1 - running_mean) * scale + beta                   # (NB,)
    w_full = w1_f @ w2.T                                        # (D_in, C)  f32
    b_full = b1_f @ w2.T + b2                                   # (C,)       f32

    # --- lane-dense classifier dim; K (=D_in) and B stay unpadded ---
    C_pad = _round_up(C, 128)
    w_p = jnp.zeros((D_in, C_pad), jnp.float32).at[:, :C].set(w_full)
    w_p = w_p.astype(jnp.bfloat16)                              # tiny, MXU-native
    b_p = jnp.zeros((1, C_pad), jnp.float32).at[0, :C].set(b_full)

    # --- batch tiling: only pad B to a multiple of 8 (<= 7 extra rows) ---
    B_pad = _round_up(B, 8)
    if B_pad != B:
        x = jnp.pad(x, ((0, B_pad - B), (0, 0)))
    # Large tile to amortize per-step overhead, but keep >= 2 grid steps so the
    # "parallel" batch axis can be split across v7x's two TensorCores.
    half_b = _round_up(max(B_pad // 2, 8), 8)
    tile_b_eff = max(8, min(tile_b, half_b, B_pad))
    grid = (pl.cdiv(B_pad, tile_b_eff),)

    cost = pl.CostEstimate(
        flops=2 * B_pad * D_in * C_pad,
        transcendentals=0,
        bytes_accessed=(4 * B_pad * D_in          # x (f32, read once)
                        + 2 * D_in * C_pad        # collapsed weight (bf16)
                        + 4 * C_pad               # bias (f32)
                        + 4 * B_pad * C_pad),     # output (f32)
    )

    out_p = pl.pallas_call(
        classblock_kernel,
        out_shape=jax.ShapeDtypeStruct((B_pad, C_pad), jnp.float32),
        grid=grid,
        in_specs=[
            pl.BlockSpec((tile_b_eff, D_in), lambda i: (i, 0)),  # x: tiled over B
            pl.BlockSpec((D_in, C_pad), lambda i: (0, 0)),       # W: VMEM-resident
            pl.BlockSpec((1, C_pad), lambda i: (0, 0)),          # b: VMEM-resident
        ],
        out_specs=pl.BlockSpec((tile_b_eff, C_pad), lambda i: (i, 0)),
        compiler_params=pltpu.CompilerParams(
            dimension_semantics=("parallel",),
        ),
        cost_estimate=cost,
    )(x, w_p, b_p)

    # TODO(synk): emit a bf16 output here if downstream tolerates it (halves the
    # padded-output HBM writeback; most useful on v5e's lower HBM BW).
    return out_p[:B, :C]


def reference_forward(x, w1, b1, gamma, beta, running_mean, running_var, w2, b2):
    eps = 1e-5
    h = x @ w1.T + b1
    h = (h - running_mean) / jnp.sqrt(running_var + eps) * gamma + beta
    return h @ w2.T + b2


if __name__ == "__main__":
    # ClassBlock(input_dim=64, class_num=32, droprate=0.5, num_bottleneck=128)
    B, D_IN, NB, C = 8, 64, 128, 32

    key = jax.random.PRNGKey(0)
    kx, kw1, kg, kw2 = jax.random.split(key, 4)

    x = jax.random.normal(kx, (B, D_IN), dtype=jnp.float32)

    # weights_init_kaiming for Linear: kaiming_normal_(mode='fan_out') -> std = sqrt(2/fan_out)
    w1 = jax.random.normal(kw1, (NB, D_IN), dtype=jnp.float32) * jnp.sqrt(2.0 / NB)
    b1 = jnp.zeros((NB,), dtype=jnp.float32)

    # BatchNorm1d init per weights_init_kaiming: weight ~ N(1, 0.02), bias = 0
    gamma = 1.0 + 0.02 * jax.random.normal(kg, (NB,), dtype=jnp.float32)
    beta = jnp.zeros((NB,), dtype=jnp.float32)
    running_mean = jnp.zeros((NB,), dtype=jnp.float32)
    running_var = jnp.ones((NB,), dtype=jnp.float32)

    # weights_init_classifier: weight ~ N(0, 0.001), bias = 0
    w2 = 0.001 * jax.random.normal(kw2, (C, NB), dtype=jnp.float32)
    b2 = jnp.zeros((C,), dtype=jnp.float32)

    out = classblock_forward(x, w1, b1, gamma, beta, running_mean, running_var, w2, b2)
    out = jax.block_until_ready(out)

    ref = reference_forward(x, w1, b1, gamma, beta, running_mean, running_var, w2, b2)
    assert out.shape == (B, C)
    # bf16 MXU inputs with f32 accumulation: compare at bf16-level tolerance.
    assert jnp.allclose(out, ref, atol=1e-3, rtol=2e-2), "mismatch vs reference"

    print("KERNEL_OK")
</pallas_src>

<mosaic_0001>
module attributes {stable_mosaic.version = 11 : i64} {
  func.func @classblock_kernel(%arg0: i32, %arg1: memref<8x64xf32, #tpu.memory_space<vmem>>, %arg2: memref<64x128xbf16, #tpu.memory_space<vmem>>, %arg3: memref<1x128xf32, #tpu.memory_space<vmem>>, %arg4: memref<8x128xf32, #tpu.memory_space<vmem>>) attributes {dimension_semantics = [#tpu.dimension_semantics<parallel>], iteration_bounds = array<i64: 1>, scalar_prefetch = 0 : i64, scratch_operands = 0 : i64, tpu.core_type = #tpu.core_type<tc>, window_params = [{transform_indices = @transform_0, window_bounds = array<i64: 8, 64>}, {pipeline_mode = #tpu.pipeline_mode<synchronous>, transform_indices = @transform_1, window_bounds = array<i64: 64, 128>}, {pipeline_mode = #tpu.pipeline_mode<synchronous>, transform_indices = @transform_2, window_bounds = array<i64: 1, 128>}, {transform_indices = @transform_3, window_bounds = array<i64: 8, 128>}]} {
    %c0 = arith.constant 0 : index
    %c0_0 = arith.constant 0 : index
    %0 = vector.load %arg1[%c0, %c0_0] : memref<8x64xf32, #tpu.memory_space<vmem>>, vector<8x64xf32>
    %1 = arith.truncf %0 : vector<8x64xf32> to vector<8x64xbf16>
    %c0_1 = arith.constant 0 : index
    %c0_2 = arith.constant 0 : index
    %2 = vector.load %arg2[%c0_1, %c0_2] : memref<64x128xbf16, #tpu.memory_space<vmem>>, vector<64x128xbf16>
    %cst = arith.constant dense<0.000000e+00> : vector<8x128xf32>
    %3 = tpu.matmul %1, %2, %cst {dimension_numbers = #tpu.dot_dimension_numbers<[1], [0], [0], [1], [0, 0, 1, 1], [], []>} : vector<8x64xbf16>, vector<64x128xbf16>, vector<8x128xf32> -> vector<8x128xf32>
    %c0_3 = arith.constant 0 : index
    %c0_4 = arith.constant 0 : index
    %4 = vector.load %arg3[%c0_3, %c0_4] : memref<1x128xf32, #tpu.memory_space<vmem>>, vector<1x128xf32>
    %5 = vector.broadcast %4 : vector<1x128xf32> to vector<8x128xf32>
    %6 = arith.addf %3, %5 : vector<8x128xf32>
    %c0_5 = arith.constant 0 : index
    %c0_6 = arith.constant 0 : index
    %7 = vector.load %arg4[%c0_5, %c0_6] : memref<8x128xf32, #tpu.memory_space<vmem>>, vector<8x128xf32>
    tpu.vector_store %arg4[%c0_5, %c0_6], %6 {strides = array<i32>} : memref<8x128xf32, #tpu.memory_space<vmem>>, vector<8x128xf32>,
    return
  }
  func.func @transform_0(%arg0: i32) -> (i32, i32) {
    %c0_i32 = arith.constant 0 : i32
    %c0_i32_0 = arith.constant 0 : i32
    return %arg0, %c0_i32 : i32, i32
  }
  func.func @transform_1(%arg0: i32) -> (i32, i32) {
    %c0_i32 = arith.constant 0 : i32
    %c0_i32_0 = arith.constant 0 : i32
    %c0_i32_1 = arith.constant 0 : i32
    return %c0_i32, %c0_i32_0 : i32, i32
  }
  func.func @transform_2(%arg0: i32) -> (i32, i32) {
    %c0_i32 = arith.constant 0 : i32
    %c0_i32_0 = arith.constant 0 : i32
    %c0_i32_1 = arith.constant 0 : i32
    return %c0_i32, %c0_i32_0 : i32, i32
  }
  func.func @transform_3(%arg0: i32) -> (i32, i32) {
    %c0_i32 = arith.constant 0 : i32
    %c0_i32_0 = arith.constant 0 : i32
    return %arg0, %c0_i32 : i32, i32
  }
}

</mosaic_0001>

<llo_original>
// kernel: classblock_forward.1
$region0: #{classblock_forward.1}
  #allocation0 [shape = 'u32[]', space=smem, size = 0x4, offset = 0x4, fixed_abs, tag = 'smem constant byte address 0x4 - core index']
  #allocation1 [shape = 'u32[72,128]{1,0:T(1,128)}', space=vmem, size = 0x9000, scoped, tag = 'internal scratch']
  %s0 = inlined_call_operand.vmem [shape: f32[8,64], index: 0, kind: input, shape index: {}]
  %s1 = inlined_call_operand.vmem [shape: bf16[64,128], index: 1, kind: input, shape index: {}]
  %s2 = inlined_call_operand.vmem [shape: f32[1,128], index: 2, kind: input, shape index: {}]
  %s3 = inlined_call_operand.hbm [shape: f32[8,128], index: 3, kind: output, shape index: {}]
  %s4 = sld [smem:[#allocation0]]
  $region22: #{classblock_forward.1} parent=0
    _
  %s6 = ssub.s32 1, %s4
  %s7 = scalar_select 0, %s6, %s4
  $region1: #{classblock_forward.1} parent=0
    #allocation2 [shape = 'u8[4096]{0}', space=vmem, size = 0x1000, scoped, tag = 'output window, operand 0, single buffered']
    #allocation3 [shape = 's32[1]{0}', space=sflag, size = 0x4, scoped, tag = 'scoped memory for classblock_forward.1']
    %8 = vsyncpa [#allocation3], 0
    // Predicated region
    $region2: #{classblock_forward.1} parent=1 // pred_check
      _
    $region3: #{classblock_forward.1} parent=1 // pred_check_branch
      %10 = sbr.rel (0) target = $region5
    $region4: #{classblock_forward.1} parent=1 // pred_region
      _
    $region5: #{classblock_forward.1} parent=1 // pred_fallthru
      _
    // Predicated region
    $region6: #{classblock_forward.1} parent=1 // pred_check
      _
    $region7: #{classblock_forward.1} parent=1 // pred_check_branch
      %12 = sbr.rel (0) target = $region9
    $region8: #{classblock_forward.1} parent=1 // pred_region
      _
    $region9: #{classblock_forward.1} parent=1 // pred_fallthru
      _
    // Predicated region
    $region10: #{classblock_forward.1} parent=1 // pred_check
      _
    $region11: #{classblock_forward.1} parent=1 // pred_check_branch
      %14 = sbr.rel (0) target = $region13
    $region12: #{classblock_forward.1} parent=1 // pred_region
      _
    $region13: #{classblock_forward.1} parent=1 // pred_fallthru
      _
    %v16 = vld [vmem:[%s0] sm:$0xff]
    %v17 = vpack.c.bf16 %v16, %v16
    %v18 = vld [vmem:[%s1] sm:$0xf]
    %v19 = vld [vmem:[%s1 + $0x4] sm:$0xf]
    %v20 = vld [vmem:[%s1 + $0x8] sm:$0xf]
    %v21 = vld [vmem:[%s1 + $0xc] sm:$0xf]
    %v22 = vld [vmem:[%s1 + $0x10] sm:$0xf]
    %v23 = vld [vmem:[%s1 + $0x14] sm:$0xf]
    %v24 = vld [vmem:[%s1 + $0x18] sm:$0xf]
    %v25 = vld [vmem:[%s1 + $0x1c] sm:$0xf]
    %v26 = vld [vmem:[%s2] sm:$0x1]
    %v28 = vperm.slane %v26, 0
    %v38 = vunpack.c.l.b16 %v18
    %v39 = vunpack.c.l.b16 %v19
    %v40 = vunpack.c.l.b16 %v20
    %v41 = vunpack.c.l.b16 %v21
    %v42 = vunpack.c.l.b16 %v22
    %v43 = vunpack.c.l.b16 %v23
    %v44 = vunpack.c.l.b16 %v24
    %v45 = vunpack.c.l.b16 %v25
    %v46 = vpack.c.b16 %v39, %v38
    %v47 = vpack.c.b16 %v41, %v40
    %v48 = vpack.c.b16 %v43, %v42
    %v49 = vpack.c.b16 %v45, %v44
    %vm54 = vcmask 523264
    %v56 = vsel %vm54, %v17, 0
    %58 = vmatpush.bf16.msra.mxu0 0
    %59 = vmatpush.bf16.msra.mxu0 0
    %60 = vmatpush.bf16.msra.mxu0 0
    %61 = vmatpush.bf16.msra.mxu0 0
    %62 = vmatpush.bf16.msra.mxu0 %v49
    %63 = vmatpush.bf16.msra.mxu0 %v48
    %64 = vmatpush.bf16.msra.mxu0 %v47
    %65 = vmatpush.bf16.msra.mxu0 %v46
    %66 = vmatmul.bf16.gmra.mxu0 %v56
    %v67 = vpop.f32.mrf.mxu0
    %v68 = vadd.f32 %v28, %v67
    %v69 = vpop.f32.mrf.mxu0
    %70 = vdwg.mxu0
    %71 = vst [vmem:[#allocation2] sm:$0xff] %v68
    // Predicated region
    $region14: #{classblock_forward.1} parent=1 // pred_check
      _
    $region15: #{classblock_forward.1} parent=1 // pred_check_branch
      %73 = sbr.rel (0) target = $region17
    $region16: #{classblock_forward.1} parent=1 // pred_region
      %75 = vsyncadd [#allocation3], 0
      %s77 = sshll.u32 [#allocation2], 4
      %s78 = int_to_ptr.vmem [resolvable:$true] %s77
      %s79 = sshll.u32 %s3, 4
      %s80 = int_to_ptr.hbm [resolvable:$true] %s79
      %82 = dma.vmem_to_hbm [thread:$0]  %s78, 128, %s80, [#allocation3]
    $region17: #{classblock_forward.1} parent=1 // pred_fallthru
      _
    // Predicated region
    $region18: #{classblock_forward.1} parent=1 // pred_check
      _
    $region19: #{classblock_forward.1} parent=1 // pred_check_branch
      %84 = sbr.rel (0) target = $region21
    $region20: #{classblock_forward.1} parent=1 // pred_region
      %86 = dma.done [#allocation3], 128
    $region21: #{classblock_forward.1} parent=1 // pred_fallthru
      _
    %87 = vsyncpa [#allocation3], 1

</llo_original>
